<compile_context>
chip_gen: v6e
topology: v6e:2x2x1
jax: 0.10.0
libtpu: 0.0.40
codegen_flags: <defaults>
</compile_context>

<pallas_src>
import functools
import math

import numpy as np
import jax
import jax.numpy as jnp
from jax.experimental import pallas as pl
from jax.experimental.pallas import tpu as pltpu


_NODE_PAD = 512                       # pad node count to this multiple
_ADJ_BUF_BUDGET = 16 * 1024 * 1024    # double-buffered bf16 adj tile budget
_PROJ_BUF_BUDGET = 16 * 1024 * 1024   # double-buffered f32 x tile budget


def _round_up(v, m):
    return ((v + m - 1) // m) * m


def _pick_proj_tile(n_pad, f):
    for tm in (2048, 1024, 512, 256, 128):
        if n_pad % tm == 0 and tm * f * 4 * 2 <= _PROJ_BUF_BUDGET:
            return tm
    return 128


def _pick_score_tiles(n_pad):
    # Prefer full-K (single reduction step: msg resident, no accumulator
    # revisit / read-modify-write across K).
    for tm in (1024, 512, 256, 128):
        if n_pad % tm == 0 and tm * n_pad * 2 * 2 <= _ADJ_BUF_BUDGET:
            return tm, n_pad
    # Very large graphs: tile the reduction axis with wide K tiles.
    tm = 256 if n_pad % 256 == 0 else 128
    for tk in (8192, 4096, 2048, 1024, 512):
        if n_pad % tk == 0 and tm * tk * 2 * 2 <= _ADJ_BUF_BUDGET:
            return tm, tk
    return tm, 512


# ----------------------------------------------------------------------------
# Kernel 1: projection.  One MXU push per row tile:
#   (TM, F) @ (F, 2) -> (TM, 2);  col 0 = self term (f32), col 1 = msg (bf16).
# x is streamed from HBM exactly once (row-tiled, pipelined, "parallel").
# ----------------------------------------------------------------------------
def _proj_kernel(x_ref, w_ref, self_ref, msg_ref):
    p = jnp.dot(x_ref[...], w_ref[...],
                preferred_element_type=jnp.float32)          # (TM, 2)
    self_ref[...] = p[:, 0:1]
    msg_ref[...] = p[:, 1:2].astype(jnp.bfloat16)            # bf16 MXU feed


def graphconv_proj(x_pad, w_cat, tm):
    n_pad, f = x_pad.shape
    return pl.pallas_call(
        _proj_kernel,
        grid_spec=pltpu.PrefetchScalarGridSpec(
            num_scalar_prefetch=0,
            grid=(n_pad // tm,),
            in_specs=[
                pl.BlockSpec((tm, f), lambda i: (i, 0)),
                pl.BlockSpec((f, 2), lambda i: (0, 0)),
            ],
            out_specs=[
                pl.BlockSpec((tm, 1), lambda i: (i, 0)),
                pl.BlockSpec((tm, 1), lambda i: (i, 0)),
            ],
        ),
        out_shape=(jax.ShapeDtypeStruct((n_pad, 1), jnp.float32),
                   jax.ShapeDtypeStruct((n_pad, 1), jnp.bfloat16)),
        compiler_params=pltpu.CompilerParams(
            dimension_semantics=("parallel",)),
    )(x_pad, w_cat)


# ----------------------------------------------------------------------------
# Kernel 2: score = tanh(self + A @ msg + b).
# adj (bf16) and msg (bf16) go straight to the MXU with f32 accumulation; the
# f32 output block is the accumulator across the (usually single-step) K axis.
# ----------------------------------------------------------------------------
def _score_kernel(self_ref, msg_ref, adj_ref, b_ref, out_ref):
    kk = pl.program_id(1)

    @pl.when(kk == 0)
    def _init():
        out_ref[...] = self_ref[...] + b_ref[0, 0]

    out_ref[...] += jnp.dot(adj_ref[...], msg_ref[...],
                            preferred_element_type=jnp.float32)

    @pl.when(kk == pl.num_programs(1) - 1)
    def _finish():
        out_ref[...] = jnp.tanh(out_ref[...])


def graphconv_score(self_pad, msg_pad, adj_bf16, bias, tm, tk):
    n_pad = adj_bf16.shape[0]
    return pl.pallas_call(
        _score_kernel,
        grid_spec=pltpu.PrefetchScalarGridSpec(
            num_scalar_prefetch=0,
            grid=(n_pad // tm, n_pad // tk),
            in_specs=[
                pl.BlockSpec((tm, 1), lambda i, k: (i, 0)),          # self term
                pl.BlockSpec((tk, 1), lambda i, k: (k, 0)),          # messages
                pl.BlockSpec((tm, tk), lambda i, k: (i, k)),         # adj (bf16)
                pl.BlockSpec(memory_space=pltpu.MemorySpace.SMEM),   # bias
            ],
            out_specs=pl.BlockSpec((tm, 1), lambda i, k: (i, 0)),
        ),
        out_shape=jax.ShapeDtypeStruct((n_pad, 1), jnp.float32),
        compiler_params=pltpu.CompilerParams(
            dimension_semantics=("parallel", "arbitrary"),
            vmem_limit_bytes=40 * 1024 * 1024),
    )(self_pad, msg_pad, adj_bf16, bias)


# ----------------------------------------------------------------------------
# Kernel 3: pooled feature gather + scaling:
#   x'[r] = multiplier * x[perm[r]] * score[perm[r]]
# perm is scalar-prefetched (SMEM); score[perm] arrives as a dense (B, 1)
# block; B rows are gathered per grid step and written with ONE dense (B, F)
# store (multiplier folded into the kernel).
# ----------------------------------------------------------------------------
def _pool_kernel(perm_ref, x_ref, sp_ref, out_ref, *, block_rows, multiplier):
    base = pl.program_id(0) * block_rows
    rows = [x_ref[pl.ds(perm_ref[base + j], 1), :] for j in range(block_rows)]
    gathered = jnp.concatenate(rows, axis=0)              # (B, F) dense block
    scale = sp_ref[...]                                    # (B, 1) score[perm]
    if multiplier != 1.0:
        scale = scale * multiplier
    out_ref[...] = gathered * scale                        # single dense store


def gather_pool(x, perm, score_perm, multiplier=1.0):
    n, f = x.shape
    k = perm.shape[0]
    block_rows = 32 if k >= 32 else 8
    k_pad = _round_up(k, block_rows)
    perm_pad = jnp.pad(perm, (0, k_pad - k))               # index 0 is valid
    sp_pad = jnp.pad(score_perm, (0, k_pad - k)).reshape(k_pad, 1)

    # TODO(synk): for very large graphs x should not be held fully
    # VMEM-resident (v7x: 64 MiB physical); switch to a scalar-prefetch
    # row-gather BlockSpec on x once N*F*4 approaches the VMEM budget.
    out = pl.pallas_call(
        functools.partial(_pool_kernel, block_rows=block_rows,
                          multiplier=float(multiplier)),
        grid_spec=pltpu.PrefetchScalarGridSpec(
            num_scalar_prefetch=1,
            grid=(k_pad // block_rows,),
            in_specs=[
                pl.BlockSpec((n, f), lambda i, p: (0, 0)),           # x resident
                pl.BlockSpec((block_rows, 1), lambda i, p: (i, 0)),  # score[perm]
            ],
            out_specs=pl.BlockSpec((block_rows, f), lambda i, p: (i, 0)),
        ),
        out_shape=jax.ShapeDtypeStruct((k_pad, f), jnp.float32),
        compiler_params=pltpu.CompilerParams(
            dimension_semantics=("parallel",)),
    )(perm_pad, x, sp_pad)
    return out[:k]


# ----------------------------------------------------------------------------
# GraphConv scoring (kernels 1 + 2) and the full SAGPool forward.
# ----------------------------------------------------------------------------
def sag_scores(x, edge_index, params):
    """score = tanh(x @ W_root + A @ (x @ W_neigh) + b) via Pallas kernels 1+2.

    Returns (score (n,) f32, self (n,) f32, msg (n,) bf16); the last two are
    exposed for layered numerics testing.
    """
    n, f = x.shape
    src, dst = edge_index[0], edge_index[1]
    n_pad = _round_up(n, _NODE_PAD)

    # Dense adjacency built once, at padded size, directly in bf16 storage
    # (exact for edge multiplicities <= 256). adj[i, j] = #edges j -> i.
    adj = jnp.zeros((n_pad, n_pad), jnp.bfloat16).at[dst, src].add(1.0)

    x_pad = jnp.pad(x, ((0, n_pad - n), (0, 0)))
    w_cat = jnp.concatenate([params["w_root"], params["w_neigh"]], axis=1)

    self_pad, msg_pad = graphconv_proj(x_pad, w_cat, _pick_proj_tile(n_pad, f))
    tm, tk = _pick_score_tiles(n_pad)
    score_pad = graphconv_score(self_pad, msg_pad, adj, params["bias"], tm, tk)
    return score_pad[:n, 0], self_pad[:n, 0], msg_pad[:n, 0]


def sag_pool_forward(x, edge_index, params, ratio=0.5, multiplier=1.0):
    n = x.shape[0]
    src, dst = edge_index[0], edge_index[1]

    score1d, _, _ = sag_scores(x, edge_index, params)

    # excluded_nodes is None -> effective ratio collapses to ceil(ratio*N)/N.
    k = int(math.ceil(ratio * n))
    _, perm = jax.lax.top_k(score1d, k)            # descending, like PyG topk
    perm = perm.astype(jnp.int32)
    score_perm = score1d[perm]

    # Pooled features (Pallas kernel 3): multiplier * x[perm] * score[perm].
    x_pooled = gather_pool(x, perm, score_perm, multiplier=multiplier)
    batch = jnp.zeros((k,), jnp.int32)

    # --- filter_adj: keep edges with both endpoints kept, relabel indices ---
    # TODO(synk): dynamic-size edge filtering has no static-shape Pallas
    # equivalent; done on host (glue), which forces a device sync here.
    perm_np = np.asarray(perm)
    keep_mask = np.zeros((n,), dtype=bool)
    keep_mask[perm_np] = True
    new_idx = -np.ones((n,), dtype=np.int32)
    new_idx[perm_np] = np.arange(k, dtype=np.int32)
    src_np = np.asarray(src)
    dst_np = np.asarray(dst)
    edge_keep = keep_mask[src_np] & keep_mask[dst_np]
    new_edge_index = jnp.asarray(
        np.stack([new_idx[src_np[edge_keep]], new_idx[dst_np[edge_keep]]],
                 axis=0), dtype=jnp.int32)
    edge_attr = None  # module default: edge_attr=None stays None

    return x_pooled, new_edge_index, edge_attr, batch, perm, score_perm


if __name__ == "__main__":
    key = jax.random.PRNGKey(0)
    N, F = 384, 128          # N nodes, F = in_channels
    RATIO = 0.5              # conf.pool_ratio
    MULTIPLIER = 2.0         # exercises the in-kernel multiplier fold

    k_x, k_wr, k_wn = jax.random.split(key, 3)
    x = jax.random.normal(k_x, (N, F), jnp.float32)

    # Bidirectional ring graph: edges i<->(i+1) mod N.
    idx = np.arange(N)
    src = np.concatenate([idx, (idx + 1) % N])
    dst = np.concatenate([(idx + 1) % N, idx])
    edge_index = jnp.asarray(np.stack([src, dst], axis=0), dtype=jnp.int32)

    # Deterministic GraphConv(in_channels, 1) parameters.
    params = {
        "w_root": jax.random.normal(k_wr, (F, 1), jnp.float32) / np.sqrt(F),
        "w_neigh": jax.random.normal(k_wn, (F, 1), jnp.float32) / np.sqrt(F),
        "bias": jnp.full((1, 1), 0.1, jnp.float32),
    }

    outs = sag_pool_forward(x, edge_index, params, ratio=RATIO,
                            multiplier=MULTIPLIER)
    x_pooled, new_ei, _, batch, perm, score_perm = outs
    jax.block_until_ready((x_pooled, new_ei, batch, perm, score_perm))

    # ------------------------ layered numerics checks ------------------------
    score_k, self_k, msg_k = jax.block_until_ready(
        sag_scores(x, edge_index, params))
    score_k = np.asarray(score_k)
    self_k = np.asarray(self_k)
    msg_k = np.asarray(msg_k.astype(jnp.float32))

    x_np = np.asarray(x)
    wr = np.asarray(params["w_root"])
    wn = np.asarray(params["w_neigh"])
    b = float(np.asarray(params["bias"])[0, 0])
    adj_np = np.zeros((N, N), np.float32)
    adj_np[dst, src] = 1.0

    # (a) projection vs pure-f32 reference (kernel uses the MXU bf16 data path).
    np.testing.assert_allclose(self_k, (x_np @ wr)[:, 0], rtol=2e-2, atol=3e-2)
    np.testing.assert_allclose(msg_k, (x_np @ wn)[:, 0], rtol=2e-2, atol=3e-2)

    # (b) score kernel is (near-)exact given its own projected messages.
    score_match = np.tanh(self_k + adj_np @ msg_k + b)
    np.testing.assert_allclose(score_k, score_match, atol=2e-4)

    # (c) end-to-end score vs pure-f32 reference (bf16 data-path tolerance).
    score_f32 = np.tanh(x_np @ wr + adj_np @ (x_np @ wn) + b)[:, 0]
    np.testing.assert_allclose(score_k, score_f32, atol=5e-2)

    # (d) top-k selection matches the precision-matched reference.
    k = int(math.ceil(RATIO * N))
    perm_np = np.asarray(perm)
    topk_ref = np.sort(np.argsort(-score_match, kind="stable")[:k])
    np.testing.assert_array_equal(np.sort(perm_np), topk_ref)

    # (e) gather/scale kernel is exact given the kernel's own scores.
    np.testing.assert_allclose(np.asarray(score_perm), score_k[perm_np],
                               rtol=1e-6, atol=1e-6)
    x_ref_pooled = MULTIPLIER * x_np[perm_np] * score_k[perm_np][:, None]
    np.testing.assert_allclose(np.asarray(x_pooled), x_ref_pooled,
                               rtol=1e-5, atol=1e-5)

    # (f) bookkeeping outputs.
    np.testing.assert_array_equal(np.asarray(batch), np.zeros((k,), np.int32))
    new_ei_np = np.asarray(new_ei)
    assert new_ei_np.shape[0] == 2
    assert new_ei_np.size == 0 or (new_ei_np.min() >= 0 and new_ei_np.max() < k)

    print("KERNEL_OK")
</pallas_src>

<mosaic_0001>
module attributes {stable_mosaic.version = 11 : i64} {
  func.func @_proj_kernel(%arg0: i32, %arg1: memref<512x128xf32, #tpu.memory_space<vmem>>, %arg2: memref<128x2xf32, #tpu.memory_space<vmem>>, %arg3: memref<512x1xf32, #tpu.memory_space<vmem>>, %arg4: memref<512x1xbf16, #tpu.memory_space<vmem>>) attributes {dimension_semantics = [#tpu.dimension_semantics<parallel>], iteration_bounds = array<i64: 1>, scalar_prefetch = 0 : i64, scratch_operands = 0 : i64, tpu.core_type = #tpu.core_type<tc>, window_params = [{transform_indices = @transform_0, window_bounds = array<i64: 512, 128>}, {pipeline_mode = #tpu.pipeline_mode<synchronous>, transform_indices = @transform_1, window_bounds = array<i64: 128, 2>}, {transform_indices = @transform_2, window_bounds = array<i64: 512, 1>}, {transform_indices = @transform_3, window_bounds = array<i64: 512, 1>}]} {
    %c0 = arith.constant 0 : index
    %c0_0 = arith.constant 0 : index
    %0 = vector.load %arg1[%c0, %c0_0] : memref<512x128xf32, #tpu.memory_space<vmem>>, vector<512x128xf32>
    %c0_1 = arith.constant 0 : index
    %c0_2 = arith.constant 0 : index
    %1 = vector.load %arg2[%c0_1, %c0_2] : memref<128x2xf32, #tpu.memory_space<vmem>>, vector<128x2xf32>
    %cst = arith.constant dense<0.000000e+00> : vector<512x2xf32>
    %2 = tpu.matmul %0, %1, %cst {dimension_numbers = #tpu.dot_dimension_numbers<[1], [0], [0], [1], [0, 0, 1, 1], [], []>} : vector<512x128xf32>, vector<128x2xf32>, vector<512x2xf32> -> vector<512x2xf32>
    %3 = vector.extract_strided_slice %2 {offsets = [0, 0], sizes = [512, 1], strides = [1, 1]} : vector<512x2xf32> to vector<512x1xf32>
    %c0_3 = arith.constant 0 : index
    %c0_4 = arith.constant 0 : index
    %4 = vector.load %arg3[%c0_3, %c0_4] : memref<512x1xf32, #tpu.memory_space<vmem>>, vector<512x1xf32>
    tpu.vector_store %arg3[%c0_3, %c0_4], %3 {strides = array<i32>} : memref<512x1xf32, #tpu.memory_space<vmem>>, vector<512x1xf32>,
    %5 = vector.extract_strided_slice %2 {offsets = [0, 1], sizes = [512, 1], strides = [1, 1]} : vector<512x2xf32> to vector<512x1xf32>
    %6 = arith.truncf %5 : vector<512x1xf32> to vector<512x1xbf16>
    %c0_5 = arith.constant 0 : index
    %c0_6 = arith.constant 0 : index
    %7 = vector.load %arg4[%c0_5, %c0_6] : memref<512x1xbf16, #tpu.memory_space<vmem>>, vector<512x1xbf16>
    tpu.vector_store %arg4[%c0_5, %c0_6], %6 {strides = array<i32>} : memref<512x1xbf16, #tpu.memory_space<vmem>>, vector<512x1xbf16>,
    return
  }
  func.func @transform_0(%arg0: i32) -> (i32, i32) {
    %c0_i32 = arith.constant 0 : i32
    %c0_i32_0 = arith.constant 0 : i32
    return %arg0, %c0_i32 : i32, i32
  }
  func.func @transform_1(%arg0: i32) -> (i32, i32) {
    %c0_i32 = arith.constant 0 : i32
    %c0_i32_0 = arith.constant 0 : i32
    %c0_i32_1 = arith.constant 0 : i32
    return %c0_i32, %c0_i32_0 : i32, i32
  }
  func.func @transform_2(%arg0: i32) -> (i32, i32) {
    %c0_i32 = arith.constant 0 : i32
    %c0_i32_0 = arith.constant 0 : i32
    return %arg0, %c0_i32 : i32, i32
  }
  func.func @transform_3(%arg0: i32) -> (i32, i32) {
    %c0_i32 = arith.constant 0 : i32
    %c0_i32_0 = arith.constant 0 : i32
    return %arg0, %c0_i32 : i32, i32
  }
}

</mosaic_0001>

<llo_original>
// kernel: tpu_custom_call.1
$region0: #{tpu_custom_call.1}
  #allocation0 [shape = 'u32[]', space=smem, size = 0x4, offset = 0x4, fixed_abs, tag = 'smem constant byte address 0x4 - core index']
  #allocation1 [shape = 'u32[144,128]{1,0:T(1,128)}', space=vmem, size = 0x12000, scoped, tag = 'internal scratch']
  %s0 = inlined_call_operand.hbm [shape: f32[512,128], index: 0, kind: input, shape index: {}]
  %s1 = inlined_call_operand.vmem [shape: f32[128,2], index: 1, kind: input, shape index: {}]
  %s2 = inlined_call_operand.vmem [shape: f32[512,1], index: 2, kind: output, shape index: {0}]
  %s3 = inlined_call_operand.vmem [shape: bf16[512,1], index: 3, kind: output, shape index: {1}]
  %4 = xla_tuple %s2, %s3
  %s5 = sld [smem:[#allocation0]]
  $region30: #{tpu_custom_call.1} parent=0
    _
  %s7 = ssub.s32 1, %s5
  %s8 = scalar_select 0, %s7, %s5
  $region1: #{tpu_custom_call.1} parent=0
    #allocation2 [shape = 'u8[262144]{0}', space=vmem, size = 0x40000, scoped, tag = 'input window, operand 0, single buffered']
    #allocation3 [shape = 's32[1]{0}', space=sflag, size = 0x4, scoped, tag = 'scoped memory for tpu_custom_call.1']
    %9 = vsyncpa [#allocation3], 0
    // Predicated region
    $region2: #{tpu_custom_call.1} parent=1 // pred_check
      _
    $region3: #{tpu_custom_call.1} parent=1 // pred_check_branch
      %11 = sbr.rel (0) target = $region5
    $region4: #{tpu_custom_call.1} parent=1 // pred_region
      %s13 = ssub.s32 8192, 8192
      %14 = vsyncadd [#allocation3], %s13
      %s15 = sshll.u32 [#allocation2], 4
      %s16 = int_to_ptr.vmem [resolvable:$true] %s15
      %21 = dma.hbm_to_vmem [thread:$0]  %s0, 8192, %s16, [#allocation3], 128, 128, 8
    $region5: #{tpu_custom_call.1} parent=1 // pred_fallthru
      _
    // Predicated region
    $region6: #{tpu_custom_call.1} parent=1 // pred_check
      _
    $region7: #{tpu_custom_call.1} parent=1 // pred_check_branch
      %23 = sbr.rel (0) target = $region9
    $region8: #{tpu_custom_call.1} parent=1 // pred_region
      _
    $region9: #{tpu_custom_call.1} parent=1 // pred_fallthru
      _
    // Predicated region
    $region10: #{tpu_custom_call.1} parent=1 // pred_check
      _
    $region11: #{tpu_custom_call.1} parent=1 // pred_check_branch
      %25 = sbr.rel (0) target = $region13
    $region12: #{tpu_custom_call.1} parent=1 // pred_region
      %26 = dma.done [#allocation3], 8192
    $region13: #{tpu_custom_call.1} parent=1 // pred_fallthru
      _
    %v27 = vld [vmem:[#allocation2] sm:$0xff]
    %v28 = vld [vmem:[#allocation2 + $0x8] sm:$0xff]
    %v29 = vld [vmem:[#allocation2 + $0x10] sm:$0xff]
    %v30 = vld [vmem:[#allocation2 + $0x18] sm:$0xff]
    %v31 = vld [vmem:[#allocation2 + $0x20] sm:$0xff]
    %v32 = vld [vmem:[#allocation2 + $0x28] sm:$0xff]
    %v33 = vld [vmem:[#allocation2 + $0x30] sm:$0xff]
    %v34 = vld [vmem:[#allocation2 + $0x38] sm:$0xff]
    %v35 = vld [vmem:[#allocation2 + $0x40] sm:$0xff]
    %v36 = vld [vmem:[#allocation2 + $0x48] sm:$0xff]
    %v37 = vld [vmem:[#allocation2 + $0x50] sm:$0xff]
    %v38 = vld [vmem:[#allocation2 + $0x58] sm:$0xff]
    %v39 = vld [vmem:[#allocation2 + $0x60] sm:$0xff]
    %v40 = vld [vmem:[#allocation2 + $0x68] sm:$0xff]
    %v41 = vld [vmem:[#allocation2 + $0x70] sm:$0xff]
    %v42 = vld [vmem:[#allocation2 + $0x78] sm:$0xff]
    %v43 = vld [vmem:[#allocation2 + $0x80] sm:$0xff]
    %v44 = vld [vmem:[#allocation2 + $0x88] sm:$0xff]
    %v45 = vld [vmem:[#allocation2 + $0x90] sm:$0xff]
    %v46 = vld [vmem:[#allocation2 + $0x98] sm:$0xff]
    %v47 = vld [vmem:[#allocation2 + $0xa0] sm:$0xff]
    %v48 = vld [vmem:[#allocation2 + $0xa8] sm:$0xff]
    %v49 = vld [vmem:[#allocation2 + $0xb0] sm:$0xff]
    %v50 = vld [vmem:[#allocation2 + $0xb8] sm:$0xff]
    %v51 = vld [vmem:[#allocation2 + $0xc0] sm:$0xff]
    %v52 = vld [vmem:[#allocation2 + $0xc8] sm:$0xff]
    %v53 = vld [vmem:[#allocation2 + $0xd0] sm:$0xff]
    %v54 = vld [vmem:[#allocation2 + $0xd8] sm:$0xff]
    %v55 = vld [vmem:[#allocation2 + $0xe0] sm:$0xff]
    %v56 = vld [vmem:[#allocation2 + $0xe8] sm:$0xff]
    %v57 = vld [vmem:[#allocation2 + $0xf0] sm:$0xff]
    %v58 = vld [vmem:[#allocation2 + $0xf8] sm:$0xff]
    %v59 = vld [vmem:[#allocation2 + $0x100] sm:$0xff]
    %v60 = vld [vmem:[#allocation2 + $0x108] sm:$0xff]
    %v61 = vld [vmem:[#allocation2 + $0x110] sm:$0xff]
    %v62 = vld [vmem:[#allocation2 + $0x118] sm:$0xff]
    %v63 = vld [vmem:[#allocation2 + $0x120] sm:$0xff]
    %v64 = vld [vmem:[#allocation2 + $0x128] sm:$0xff]
    %v65 = vld [vmem:[#allocation2 + $0x130] sm:$0xff]
    %v66 = vld [vmem:[#allocation2 + $0x138] sm:$0xff]
    %v67 = vld [vmem:[#allocation2 + $0x140] sm:$0xff]
    %v68 = vld [vmem:[#allocation2 + $0x148] sm:$0xff]
    %v69 = vld [vmem:[#allocation2 + $0x150] sm:$0xff]
    %v70 = vld [vmem:[#allocation2 + $0x158] sm:$0xff]
    %v71 = vld [vmem:[#allocation2 + $0x160] sm:$0xff]
    %v72 = vld [vmem:[#allocation2 + $0x168] sm:$0xff]
    %v73 = vld [vmem:[#allocation2 + $0x170] sm:$0xff]
    %v74 = vld [vmem:[#allocation2 + $0x178] sm:$0xff]
    %v75 = vld [vmem:[#allocation2 + $0x180] sm:$0xff]
    %v76 = vld [vmem:[#allocation2 + $0x188] sm:$0xff]
    %v77 = vld [vmem:[#allocation2 + $0x190] sm:$0xff]
    %v78 = vld [vmem:[#allocation2 + $0x198] sm:$0xff]
    %v79 = vld [vmem:[#allocation2 + $0x1a0] sm:$0xff]
    %v80 = vld [vmem:[#allocation2 + $0x1a8] sm:$0xff]
    %v81 = vld [vmem:[#allocation2 + $0x1b0] sm:$0xff]
    %v82 = vld [vmem:[#allocation2 + $0x1b8] sm:$0xff]
    %v83 = vld [vmem:[#allocation2 + $0x1c0] sm:$0xff]
    %v84 = vld [vmem:[#allocation2 + $0x1c8] sm:$0xff]
    %v85 = vld [vmem:[#allocation2 + $0x1d0] sm:$0xff]
    %v86 = vld [vmem:[#allocation2 + $0x1d8] sm:$0xff]
    %v87 = vld [vmem:[#allocation2 + $0x1e0] sm:$0xff]
    %v88 = vld [vmem:[#allocation2 + $0x1e8] sm:$0xff]
    %v89 = vld [vmem:[#allocation2 + $0x1f0] sm:$0xff]
    %v90 = vld [vmem:[#allocation2 + $0x1f8] sm:$0xff]
    %v91 = vld [vmem:[%s1] sm:$0xff]
    %v92 = vld [vmem:[%s1 + $0x8] sm:$0xff]
    %v93 = vld [vmem:[%s1 + $0x10] sm:$0xff]
    %v94 = vld [vmem:[%s1 + $0x18] sm:$0xff]
    %v95 = vld [vmem:[%s1 + $0x20] sm:$0xff]
    %v96 = vld [vmem:[%s1 + $0x28] sm:$0xff]
    %v97 = vld [vmem:[%s1 + $0x30] sm:$0xff]
    %v98 = vld [vmem:[%s1 + $0x38] sm:$0xff]
    %v99 = vld [vmem:[%s1 + $0x40] sm:$0xff]
    %v100 = vld [vmem:[%s1 + $0x48] sm:$0xff]
    %v101 = vld [vmem:[%s1 + $0x50] sm:$0xff]
    %v102 = vld [vmem:[%s1 + $0x58] sm:$0xff]
    %v103 = vld [vmem:[%s1 + $0x60] sm:$0xff]
    %v104 = vld [vmem:[%s1 + $0x68] sm:$0xff]
    %v105 = vld [vmem:[%s1 + $0x70] sm:$0xff]
    %v106 = vld [vmem:[%s1 + $0x78] sm:$0xff]
    %107 = vmatprep.subr.mxu0 0.0
    %108 = vmatpush1.msra.mxu0 %v106
    %109 = vmatprep.subr.mxu0 0.0
    %110 = vmatpush1.msra.mxu0 %v105
    %111 = vmatprep.subr.mxu0 0.0
    %112 = vmatpush1.msra.mxu0 %v104
    %113 = vmatprep.subr.mxu0 0.0
    %114 = vmatpush1.msra.mxu0 %v103
    %115 = vmatprep.subr.mxu0 0.0
    %116 = vmatpush1.msra.mxu0 %v102
    %117 = vmatprep.subr.mxu0 0.0
    %118 = vmatpush1.msra.mxu0 %v101
    %119 = vmatprep.subr.mxu0 0.0
    %120 = vmatpush1.msra.mxu0 %v100
    %121 = vmatprep.subr.mxu0 0.0
    %122 = vmatpush1.msra.mxu0 %v99
    %123 = vmatprep.subr.mxu0 0.0
    %124 = vmatpush1.msra.mxu0 %v98
    %125 = vmatprep.subr.mxu0 0.0
    %126 = vmatpush1.msra.mxu0 %v97
    %127 = vmatprep.subr.mxu0 0.0
    %128 = vmatpush1.msra.mxu0 %v96
    %129 = vmatprep.subr.mxu0 0.0
    %130 = vmatpush1.msra.mxu0 %v95
    %131 = vmatprep.subr.mxu0 0.0
    %132 = vmatpush1.msra.mxu0 %v94
    %133 = vmatprep.subr.mxu0 0.0
    %134 = vmatpush1.msra.mxu0 %v93
    %135 = vmatprep.subr.mxu0 0.0
    %136 = vmatpush1.msra.mxu0 %v92
    %137 = vmatprep.subr.mxu0 0.0
    %138 = vmatpush1.msra.mxu0 %v91
    %139 = vmatprep.subr.mxu0 0.0
    %140 = vmatpush2.msra.mxu0 0.0
    %141 = vmatprep.subr.mxu0 0.0
    %142 = vmatpush2.msra.mxu0 0.0
    %143 = vmatprep.subr.mxu0 0.0
    %144 = vmatpush2.msra.mxu0 0.0
    %145 = vmatprep.subr.mxu0 0.0
    %146 = vmatpush2.msra.mxu0 0.0
    %147 = vmatprep.subr.mxu0 0.0
    %148 = vmatpush2.msra.mxu0 0.0
    %149 = vmatprep.subr.mxu0 0.0
    %150 = vmatpush2.msra.mxu0 0.0
    %151 = vmatprep.subr.mxu0 0.0
    %152 = vmatpush2.msra.mxu0 0.0
    %153 = vmatprep.subr.mxu0 0.0
    %154 = vmatpush2.msra.mxu0 0.0
    %155 = vmatprep.subr.mxu0 0.0
    %156 = vmatpush2.msra.mxu0 0.0
    %157 = vmatprep.subr.mxu0 0.0
    %158 = vmatpush2.msra.mxu0 0.0
    %159 = vmatprep.subr.mxu0 0.0
    %160 = vmatpush2.msra.mxu0 0.0
    %161 = vmatprep.subr.mxu0 0.0
    %162 = vmatpush2.msra.mxu0 0.0
    %163 = vmatprep.subr.mxu0 0.0
    %164 = vmatpush2.msra.mxu0 0.0
    %165 = vmatprep.subr.mxu0 0.0
    %166 = vmatpush2.msra.mxu0 0.0
    %167 = vmatprep.subr.mxu0 0.0
    %168 = vmatpush2.msra.mxu0 0.0
    %169 = vmatprep.subr.mxu0 0.0
    %170 = vmatpush2.msra.mxu0 0.0
    %171 = vmatprep.mubr.f32.mxu0 0.0
    %172 = vmatmul.mubr.f32.gmra.mxu0 %v27
    %v173 = vpop.f32.mrf.mxu0
    %v174 = vadd.f32 0.0, %v173
    %v175 = vpop.f32.mrf.mxu0
    %176 = vmatprep.mubr.f32.mxu0 0.0
    %177 = vmatmul.mubr.f32.gmra.mxu0 %v28
    %v178 = vpop.f32.mrf.mxu0
    %v179 = vadd.f32 0.0, %v178
    %v180 = vpop.f32.mrf.mxu0
    %181 = vmatprep.mubr.f32.mxu0 0.0
    %182 = vmatmul.mubr.f32.gmra.mxu0 %v29
    %v183 = vpop.f32.mrf.mxu0
    %v184 = vadd.f32 0.0, %v183
    %v185 = vpop.f32.mrf.mxu0
    %186 = vmatprep.mubr.f32.mxu0 0.0
    %187 = vmatmul.mubr.f32.gmra.mxu0 %v30
    %v188 = vpop.f32.mrf.mxu0
    %v189 = vadd.f32 0.0, %v188
    %v190 = vpop.f32.mrf.mxu0
    %191 = vmatprep.mubr.f32.mxu0 0.0
    %192 = vmatmul.mubr.f32.gmra.mxu0 %v31
    %v193 = vpop.f32.mrf.mxu0
    %v194 = vadd.f32 0.0, %v193
    %v195 = vpop.f32.mrf.mxu0
    %196 = vmatprep.mubr.f32.mxu0 0.0
    %197 = vmatmul.mubr.f32.gmra.mxu0 %v32
    %v198 = vpop.f32.mrf.mxu0
    %v199 = vadd.f32 0.0, %v198
    %v200 = vpop.f32.mrf.mxu0
    %201 = vmatprep.mubr.f32.mxu0 0.0
    %202 = vmatmul.mubr.f32.gmra.mxu0 %v33
    %v203 = vpop.f32.mrf.mxu0
    %v204 = vadd.f32 0.0, %v203
    %v205 = vpop.f32.mrf.mxu0
    %206 = vmatprep.mubr.f32.mxu0 0.0
    %207 = vmatmul.mubr.f32.gmra.mxu0 %v34
    %v208 = vpop.f32.mrf.mxu0
    %v209 = vadd.f32 0.0, %v208
    %v210 = vpop.f32.mrf.mxu0
    %211 = vmatprep.mubr.f32.mxu0 0.0
    %212 = vmatmul.mubr.f32.gmra.mxu0 %v35
    %v213 = vpop.f32.mrf.mxu0
    %v214 = vadd.f32 0.0, %v213
    %v215 = vpop.f32.mrf.mxu0
    %216 = vmatprep.mubr.f32.mxu0 0.0
    %217 = vmatmul.mubr.f32.gmra.mxu0 %v36
    %v218 = vpop.f32.mrf.mxu0
    %v219 = vadd.f32 0.0, %v218
    %v220 = vpop.f32.mrf.mxu0
    %221 = vmatprep.mubr.f32.mxu0 0.0
    %222 = vmatmul.mubr.f32.gmra.mxu0 %v37
    %v223 = vpop.f32.mrf.mxu0
    %v224 = vadd.f32 0.0, %v223
    %v225 = vpop.f32.mrf.mxu0
    %226 = vmatprep.mubr.f32.mxu0 0.0
    %227 = vmatmul.mubr.f32.gmra.mxu0 %v38
    %v228 = vpop.f32.mrf.mxu0
    %v229 = vadd.f32 0.0, %v228
    %v230 = vpop.f32.mrf.mxu0
    %231 = vmatprep.mubr.f32.mxu0 0.0
    %232 = vmatmul.mubr.f32.gmra.mxu0 %v39
    %v233 = vpop.f32.mrf.mxu0
    %v234 = vadd.f32 0.0, %v233
    %v235 = vpop.f32.mrf.mxu0
    %236 = vmatprep.mubr.f32.mxu0 0.0
    %237 = vmatmul.mubr.f32.gmra.mxu0 %v40
    %v238 = vpop.f32.mrf.mxu0
    %v239 = vadd.f32 0.0, %v238
    %v240 = vpop.f32.mrf.mxu0
    %241 = vmatprep.mubr.f32.mxu0 0.0
    %242 = vmatmul.mubr.f32.gmra.mxu0 %v41
    %v243 = vpop.f32.mrf.mxu0
    %v244 = vadd.f32 0.0, %v243
    %v245 = vpop.f32.mrf.mxu0
    %246 = vmatprep.mubr.f32.mxu0 0.0
    %247 = vmatmul.mubr.f32.gmra.mxu0 %v42
    %v248 = vpop.f32.mrf.mxu0
    %v249 = vadd.f32 0.0, %v248
    %v250 = vpop.f32.mrf.mxu0
    %251 = vmatprep.mubr.f32.mxu0 0.0
    %252 = vmatmul.mubr.f32.gmra.mxu0 %v43
    %v253 = vpop.f32.mrf.mxu0
    %v254 = vadd.f32 0.0, %v253
    %v255 = vpop.f32.mrf.mxu0
    %256 = vmatprep.mubr.f32.mxu0 0.0
    %257 = vmatmul.mubr.f32.gmra.mxu0 %v44
    %v258 = vpop.f32.mrf.mxu0
    %v259 = vadd.f32 0.0, %v258
    %v260 = vpop.f32.mrf.mxu0
    %261 = vmatprep.mubr.f32.mxu0 0.0
    %262 = vmatmul.mubr.f32.gmra.mxu0 %v45
    %v263 = vpop.f32.mrf.mxu0
    %v264 = vadd.f32 0.0, %v263
    %v265 = vpop.f32.mrf.mxu0
    %266 = vmatprep.mubr.f32.mxu0 0.0
    %267 = vmatmul.mubr.f32.gmra.mxu0 %v46
    %v268 = vpop.f32.mrf.mxu0
    %v269 = vadd.f32 0.0, %v268
    %v270 = vpop.f32.mrf.mxu0
    %271 = vmatprep.mubr.f32.mxu0 0.0
    %272 = vmatmul.mubr.f32.gmra.mxu0 %v47
    %v273 = vpop.f32.mrf.mxu0
    %v274 = vadd.f32 0.0, %v273
    %v275 = vpop.f32.mrf.mxu0
    %276 = vmatprep.mubr.f32.mxu0 0.0
    %277 = vmatmul.mubr.f32.gmra.mxu0 %v48
    %v278 = vpop.f32.mrf.mxu0
    %v279 = vadd.f32 0.0, %v278
    %v280 = vpop.f32.mrf.mxu0
    %281 = vmatprep.mubr.f32.mxu0 0.0
    %282 = vmatmul.mubr.f32.gmra.mxu0 %v49
    %v283 = vpop.f32.mrf.mxu0
    %v284 = vadd.f32 0.0, %v283
    %v285 = vpop.f32.mrf.mxu0
    %286 = vmatprep.mubr.f32.mxu0 0.0
    %287 = vmatmul.mubr.f32.gmra.mxu0 %v50
    %v288 = vpop.f32.mrf.mxu0
    %v289 = vadd.f32 0.0, %v288
    %v290 = vpop.f32.mrf.mxu0
    %291 = vmatprep.mubr.f32.mxu0 0.0
    %292 = vmatmul.mubr.f32.gmra.mxu0 %v51
    %v293 = vpop.f32.mrf.mxu0
    %v294 = vadd.f32 0.0, %v293
    %v295 = vpop.f32.mrf.mxu0
    %296 = vmatprep.mubr.f32.mxu0 0.0
    %297 = vmatmul.mubr.f32.gmra.mxu0 %v52
    %v298 = vpop.f32.mrf.mxu0
    %v299 = vadd.f32 0.0, %v298
    %v300 = vpop.f32.mrf.mxu0
    %301 = vmatprep.mubr.f32.mxu0 0.0
    %302 = vmatmul.mubr.f32.gmra.mxu0 %v53
    %v303 = vpop.f32.mrf.mxu0
    %v304 = vadd.f32 0.0, %v303
    %v305 = vpop.f32.mrf.mxu0
    %306 = vmatprep.mubr.f32.mxu0 0.0
    %307 = vmatmul.mubr.f32.gmra.mxu0 %v54
    %v308 = vpop.f32.mrf.mxu0
    %v309 = vadd.f32 0.0, %v308
    %v310 = vpop.f32.mrf.mxu0
    %311 = vmatprep.mubr.f32.mxu0 0.0
    %312 = vmatmul.mubr.f32.gmra.mxu0 %v55
    %v313 = vpop.f32.mrf.mxu0
    %v314 = vadd.f32 0.0, %v313
    %v315 = vpop.f32.mrf.mxu0
    %316 = vmatprep.mubr.f32.mxu0 0.0
    %317 = vmatmul.mubr.f32.gmra.mxu0 %v56
    %v318 = vpop.f32.mrf.mxu0
    %v319 = vadd.f32 0.0, %v318
    %v320 = vpop.f32.mrf.mxu0
    %321 = vmatprep.mubr.f32.mxu0 0.0
    %322 = vmatmul.mubr.f32.gmra.mxu0 %v57
    %v323 = vpop.f32.mrf.mxu0
    %v324 = vadd.f32 0.0, %v323
    %v325 = vpop.f32.mrf.mxu0
    %326 = vmatprep.mubr.f32.mxu0 0.0
    %327 = vmatmul.mubr.f32.gmra.mxu0 %v58
    %v328 = vpop.f32.mrf.mxu0
    %v329 = vadd.f32 0.0, %v328
    %v330 = vpop.f32.mrf.mxu0
    %331 = vmatprep.mubr.f32.mxu0 0.0
    %332 = vmatmul.mubr.f32.gmra.mxu0 %v59
    %v333 = vpop.f32.mrf.mxu0
    %v334 = vadd.f32 0.0, %v333
    %v335 = vpop.f32.mrf.mxu0
    %336 = vmatprep.mubr.f32.mxu0 0.0
    %337 = vmatmul.mubr.f32.gmra.mxu0 %v60
    %v338 = vpop.f32.mrf.mxu0
    %v339 = vadd.f32 0.0, %v338
    %v340 = vpop.f32.mrf.mxu0
    %341 = vmatprep.mubr.f32.mxu0 0.0
    %342 = vmatmul.mubr.f32.gmra.mxu0 %v61
    %v343 = vpop.f32.mrf.mxu0
    %v344 = vadd.f32 0.0, %v343
    %v345 = vpop.f32.mrf.mxu0
    %346 = vmatprep.mubr.f32.mxu0 0.0
    %347 = vmatmul.mubr.f32.gmra.mxu0 %v62
    %v348 = vpop.f32.mrf.mxu0
    %v349 = vadd.f32 0.0, %v348
    %v350 = vpop.f32.mrf.mxu0
    %351 = vmatprep.mubr.f32.mxu0 0.0
    %352 = vmatmul.mubr.f32.gmra.mxu0 %v63
    %v353 = vpop.f32.mrf.mxu0
    %v354 = vadd.f32 0.0, %v353
    %v355 = vpop.f32.mrf.mxu0
    %356 = vmatprep.mubr.f32.mxu0 0.0
    %357 = vmatmul.mubr.f32.gmra.mxu0 %v64
    %v358 = vpop.f32.mrf.mxu0
    %v359 = vadd.f32 0.0, %v358
    %v360 = vpop.f32.mrf.mxu0
    %361 = vmatprep.mubr.f32.mxu0 0.0
    %362 = vmatmul.mubr.f32.gmra.mxu0 %v65
    %v363 = vpop.f32.mrf.mxu0
    %v364 = vadd.f32 0.0, %v363
    %v365 = vpop.f32.mrf.mxu0
    %366 = vmatprep.mubr.f32.mxu0 0.0
    %367 = vmatmul.mubr.f32.gmra.mxu0 %v66
    %v368 = vpop.f32.mrf.mxu0
    %v369 = vadd.f32 0.0, %v368
    %v370 = vpop.f32.mrf.mxu0
    %371 = vmatprep.mubr.f32.mxu0 0.0
    %372 = vmatmul.mubr.f32.gmra.mxu0 %v67
    %v373 = vpop.f32.mrf.mxu0
    %v374 = vadd.f32 0.0, %v373
    %v375 = vpop.f32.mrf.mxu0
    %376 = vmatprep.mubr.f32.mxu0 0.0
    %377 = vmatmul.mubr.f32.gmra.mxu0 %v68
    %v378 = vpop.f32.mrf.mxu0
    %v379 = vadd.f32 0.0, %v378
    %v380 = vpop.f32.mrf.mxu0
    %381 = vmatprep.mubr.f32.mxu0 0.0
    %382 = vmatmul.mubr.f32.gmra.mxu0 %v69
    %v383 = vpop.f32.mrf.mxu0
    %v384 = vadd.f32 0.0, %v383
    %v385 = vpop.f32.mrf.mxu0
    %386 = vmatprep.mubr.f32.mxu0 0.0
    %387 = vmatmul.mubr.f32.gmra.mxu0 %v70
    %v388 = vpop.f32.mrf.mxu0
    %v389 = vadd.f32 0.0, %v388
    %v390 = vpop.f32.mrf.mxu0
    %391 = vmatprep.mubr.f32.mxu0 0.0
    %392 = vmatmul.mubr.f32.gmra.mxu0 %v71
    %v393 = vpop.f32.mrf.mxu0
    %v394 = vadd.f32 0.0, %v393
    %v395 = vpop.f32.mrf.mxu0
    %396 = vmatprep.mubr.f32.mxu0 0.0
    %397 = vmatmul.mubr.f32.gmra.mxu0 %v72
    %v398 = vpop.f32.mrf.mxu0
    %v399 = vadd.f32 0.0, %v398
    %v400 = vpop.f32.mrf.mxu0
    %401 = vmatprep.mubr.f32.mxu0 0.0
    %402 = vmatmul.mubr.f32.gmra.mxu0 %v73
    %v403 = vpop.f32.mrf.mxu0
    %v404 = vadd.f32 0.0, %v403
    %v405 = vpop.f32.mrf.mxu0
    %406 = vmatprep.mubr.f32.mxu0 0.0
    %407 = vmatmul.mubr.f32.gmra.mxu0 %v74
    %v408 = vpop.f32.mrf.mxu0
    %v409 = vadd.f32 0.0, %v408
    %v410 = vpop.f32.mrf.mxu0
    %411 = vmatprep.mubr.f32.mxu0 0.0
    %412 = vmatmul.mubr.f32.gmra.mxu0 %v75
    %v413 = vpop.f32.mrf.mxu0
    %v414 = vadd.f32 0.0, %v413
    %v415 = vpop.f32.mrf.mxu0
    %416 = vmatprep.mubr.f32.mxu0 0.0
    %417 = vmatmul.mubr.f32.gmra.mxu0 %v76
    %v418 = vpop.f32.mrf.mxu0
    %v419 = vadd.f32 0.0, %v418
    %v420 = vpop.f32.mrf.mxu0
    %421 = vmatprep.mubr.f32.mxu0 0.0
    %422 = vmatmul.mubr.f32.gmra.mxu0 %v77
    %v423 = vpop.f32.mrf.mxu0
    %v424 = vadd.f32 0.0, %v423
    %v425 = vpop.f32.mrf.mxu0
    %426 = vmatprep.mubr.f32.mxu0 0.0
    %427 = vmatmul.mubr.f32.gmra.mxu0 %v78
    %v428 = vpop.f32.mrf.mxu0
    %v429 = vadd.f32 0.0, %v428
    %v430 = vpop.f32.mrf.mxu0
    %431 = vmatprep.mubr.f32.mxu0 0.0
    %432 = vmatmul.mubr.f32.gmra.mxu0 %v79
    %v433 = vpop.f32.mrf.mxu0
    %v434 = vadd.f32 0.0, %v433
    %v435 = vpop.f32.mrf.mxu0
    %436 = vmatprep.mubr.f32.mxu0 0.0
    %437 = vmatmul.mubr.f32.gmra.mxu0 %v80
    %v438 = vpop.f32.mrf.mxu0
    %v439 = vadd.f32 0.0, %v438
    %v440 = vpop.f32.mrf.mxu0
    %441 = vmatprep.mubr.f32.mxu0 0.0
    %442 = vmatmul.mubr.f32.gmra.mxu0 %v81
    %v443 = vpop.f32.mrf.mxu0
    %v444 = vadd.f32 0.0, %v443
    %v445 = vpop.f32.mrf.mxu0
    %446 = vmatprep.mubr.f32.mxu0 0.0
    %447 = vmatmul.mubr.f32.gmra.mxu0 %v82
    %v448 = vpop.f32.mrf.mxu0
    %v449 = vadd.f32 0.0, %v448
    %v450 = vpop.f32.mrf.mxu0
    %451 = vmatprep.mubr.f32.mxu0 0.0
    %452 = vmatmul.mubr.f32.gmra.mxu0 %v83
    %v453 = vpop.f32.mrf.mxu0
    %v454 = vadd.f32 0.0, %v453
    %v455 = vpop.f32.mrf.mxu0
    %456 = vmatprep.mubr.f32.mxu0 0.0
    %457 = vmatmul.mubr.f32.gmra.mxu0 %v84
    %v458 = vpop.f32.mrf.mxu0
    %v459 = vadd.f32 0.0, %v458
    %v460 = vpop.f32.mrf.mxu0
    %461 = vmatprep.mubr.f32.mxu0 0.0
    %462 = vmatmul.mubr.f32.gmra.mxu0 %v85
    %v463 = vpop.f32.mrf.mxu0
    %v464 = vadd.f32 0.0, %v463
    %v465 = vpop.f32.mrf.mxu0
    %466 = vmatprep.mubr.f32.mxu0 0.0
    %467 = vmatmul.mubr.f32.gmra.mxu0 %v86
    %v468 = vpop.f32.mrf.mxu0
    %v469 = vadd.f32 0.0, %v468
    %v470 = vpop.f32.mrf.mxu0
    %471 = vmatprep.mubr.f32.mxu0 0.0
    %472 = vmatmul.mubr.f32.gmra.mxu0 %v87
    %v473 = vpop.f32.mrf.mxu0
    %v474 = vadd.f32 0.0, %v473
    %v475 = vpop.f32.mrf.mxu0
    %476 = vmatprep.mubr.f32.mxu0 0.0
    %477 = vmatmul.mubr.f32.gmra.mxu0 %v88
    %v478 = vpop.f32.mrf.mxu0
    %v479 = vadd.f32 0.0, %v478
    %v480 = vpop.f32.mrf.mxu0
    %481 = vmatprep.mubr.f32.mxu0 0.0
    %482 = vmatmul.mubr.f32.gmra.mxu0 %v89
    %v483 = vpop.f32.mrf.mxu0
    %v484 = vadd.f32 0.0, %v483
    %v485 = vpop.f32.mrf.mxu0
    %486 = vmatprep.mubr.f32.mxu0 0.0
    %487 = vmatmul.mubr.f32.gmra.mxu0 %v90
    %v488 = vpop.f32.mrf.mxu0
    %v489 = vadd.f32 0.0, %v488
    %v490 = vpop.f32.mrf.mxu0
    %491 = vdwg.mxu0
    %vm492 = vcmask 7168
    %493 = vst.msk [vmem:[%s2] sm:$0xff] %vm492, %v174
    %494 = vst.msk [vmem:[%s2 + $0x8] sm:$0xff] %vm492, %v179
    %495 = vst.msk [vmem:[%s2 + $0x10] sm:$0xff] %vm492, %v184
    %496 = vst.msk [vmem:[%s2 + $0x18] sm:$0xff] %vm492, %v189
    %497 = vst.msk [vmem:[%s2 + $0x20] sm:$0xff] %vm492, %v194
    %498 = vst.msk [vmem:[%s2 + $0x28] sm:$0xff] %vm492, %v199
    %499 = vst.msk [vmem:[%s2 + $0x30] sm:$0xff] %vm492, %v204
    %500 = vst.msk [vmem:[%s2 + $0x38] sm:$0xff] %vm492, %v209
    %501 = vst.msk [vmem:[%s2 + $0x40] sm:$0xff] %vm492, %v214
    %502 = vst.msk [vmem:[%s2 + $0x48] sm:$0xff] %vm492, %v219
    %503 = vst.msk [vmem:[%s2 + $0x50] sm:$0xff] %vm492, %v224
    %504 = vst.msk [vmem:[%s2 + $0x58] sm:$0xff] %vm492, %v229
    %505 = vst.msk [vmem:[%s2 + $0x60] sm:$0xff] %vm492, %v234
    %506 = vst.msk [vmem:[%s2 + $0x68] sm:$0xff] %vm492, %v239
    %507 = vst.msk [vmem:[%s2 + $0x70] sm:$0xff] %vm492, %v244
    %508 = vst.msk [vmem:[%s2 + $0x78] sm:$0xff] %vm492, %v249
    %509 = vst.msk [vmem:[%s2 + $0x80] sm:$0xff] %vm492, %v254
    %510 = vst.msk [vmem:[%s2 + $0x88] sm:$0xff] %vm492, %v259
    %511 = vst.msk [vmem:[%s2 + $0x90] sm:$0xff] %vm492, %v264
    %512 = vst.msk [vmem:[%s2 + $0x98] sm:$0xff] %vm492, %v269
    %513 = vst.msk [vmem:[%s2 + $0xa0] sm:$0xff] %vm492, %v274
    %514 = vst.msk [vmem:[%s2 + $0xa8] sm:$0xff] %vm492, %v279
    %515 = vst.msk [vmem:[%s2 + $0xb0] sm:$0xff] %vm492, %v284
    %516 = vst.msk [vmem:[%s2 + $0xb8] sm:$0xff] %vm492, %v289
    %517 = vst.msk [vmem:[%s2 + $0xc0] sm:$0xff] %vm492, %v294
    %518 = vst.msk [vmem:[%s2 + $0xc8] sm:$0xff] %vm492, %v299
    %519 = vst.msk [vmem:[%s2 + $0xd0] sm:$0xff] %vm492, %v304
    %520 = vst.msk [vmem:[%s2 + $0xd8] sm:$0xff] %vm492, %v309
    %521 = vst.msk [vmem:[%s2 + $0xe0] sm:$0xff] %vm492, %v314
    %522 = vst.msk [vmem:[%s2 + $0xe8] sm:$0xff] %vm492, %v319
    %523 = vst.msk [vmem:[%s2 + $0xf0] sm:$0xff] %vm492, %v324
    %524 = vst.msk [vmem:[%s2 + $0xf8] sm:$0xff] %vm492, %v329
    %525 = vst.msk [vmem:[%s2 + $0x100] sm:$0xff] %vm492, %v334
    %526 = vst.msk [vmem:[%s2 + $0x108] sm:$0xff] %vm492, %v339
    %527 = vst.msk [vmem:[%s2 + $0x110] sm:$0xff] %vm492, %v344
    %528 = vst.msk [vmem:[%s2 + $0x118] sm:$0xff] %vm492, %v349
    %529 = vst.msk [vmem:[%s2 + $0x120] sm:$0xff] %vm492, %v354
    %530 = vst.msk [vmem:[%s2 + $0x128] sm:$0xff] %vm492, %v359
    %531 = vst.msk [vmem:[%s2 + $0x130] sm:$0xff] %vm492, %v364
    %532 = vst.msk [vmem:[%s2 + $0x138] sm:$0xff] %vm492, %v369
    %533 = vst.msk [vmem:[%s2 + $0x140] sm:$0xff] %vm492, %v374
    %534 = vst.msk [vmem:[%s2 + $0x148] sm:$0xff] %vm492, %v379
    %535 = vst.msk [vmem:[%s2 + $0x150] sm:$0xff] %vm492, %v384
    %536 = vst.msk [vmem:[%s2 + $0x158] sm:$0xff] %vm492, %v389
    %537 = vst.msk [vmem:[%s2 + $0x160] sm:$0xff] %vm492, %v394
    %538 = vst.msk [vmem:[%s2 + $0x168] sm:$0xff] %vm492, %v399
    %539 = vst.msk [vmem:[%s2 + $0x170] sm:$0xff] %vm492, %v404
    %540 = vst.msk [vmem:[%s2 + $0x178] sm:$0xff] %vm492, %v409
    %541 = vst.msk [vmem:[%s2 + $0x180] sm:$0xff] %vm492, %v414
    %542 = vst.msk [vmem:[%s2 + $0x188] sm:$0xff] %vm492, %v419
    %543 = vst.msk [vmem:[%s2 + $0x190] sm:$0xff] %vm492, %v424
    %544 = vst.msk [vmem:[%s2 + $0x198] sm:$0xff] %vm492, %v429
    %545 = vst.msk [vmem:[%s2 + $0x1a0] sm:$0xff] %vm492, %v434
    %546 = vst.msk [vmem:[%s2 + $0x1a8] sm:$0xff] %vm492, %v439
    %547 = vst.msk [vmem:[%s2 + $0x1b0] sm:$0xff] %vm492, %v444
    %548 = vst.msk [vmem:[%s2 + $0x1b8] sm:$0xff] %vm492, %v449
    %549 = vst.msk [vmem:[%s2 + $0x1c0] sm:$0xff] %vm492, %v454
    %550 = vst.msk [vmem:[%s2 + $0x1c8] sm:$0xff] %vm492, %v459
    %551 = vst.msk [vmem:[%s2 + $0x1d0] sm:$0xff] %vm492, %v464
    %552 = vst.msk [vmem:[%s2 + $0x1d8] sm:$0xff] %vm492, %v469
    %553 = vst.msk [vmem:[%s2 + $0x1e0] sm:$0xff] %vm492, %v474
    %554 = vst.msk [vmem:[%s2 + $0x1e8] sm:$0xff] %vm492, %v479
    %555 = vst.msk [vmem:[%s2 + $0x1f0] sm:$0xff] %vm492, %v484
    %556 = vst.msk [vmem:[%s2 + $0x1f8] sm:$0xff] %vm492, %v489
    %v557 = vpack.c.bf16 %v179, %v174
    %v558 = vpack.c.bf16 %v189, %v184
    %v559 = vpack.c.bf16 %v199, %v194
    %v560 = vpack.c.bf16 %v209, %v204
    %v561 = vpack.c.bf16 %v219, %v214
    %v562 = vpack.c.bf16 %v229, %v224
    %v563 = vpack.c.bf16 %v239, %v234
    %v564 = vpack.c.bf16 %v249, %v244
    %v565 = vpack.c.bf16 %v259, %v254
    %v566 = vpack.c.bf16 %v269, %v264
    %v567 = vpack.c.bf16 %v279, %v274
    %v568 = vpack.c.bf16 %v289, %v284
    %v569 = vpack.c.bf16 %v299, %v294
    %v570 = vpack.c.bf16 %v309, %v304
    %v571 = vpack.c.bf16 %v319, %v314
    %v572 = vpack.c.bf16 %v329, %v324
    %v573 = vpack.c.bf16 %v339, %v334
    %v574 = vpack.c.bf16 %v349, %v344
    %v575 = vpack.c.bf16 %v359, %v354
    %v576 = vpack.c.bf16 %v369, %v364
    %v577 = vpack.c.bf16 %v379, %v374
    %v578 = vpack.c.bf16 %v389, %v384
    %v579 = vpack.c.bf16 %v399, %v394
    %v580 = vpack.c.bf16 %v409, %v404
    %v581 = vpack.c.bf16 %v419, %v414
    %v582 = vpack.c.bf16 %v429, %v424
    %v583 = vpack.c.bf16 %v439, %v434
    %v584 = vpack.c.bf16 %v449, %v444
    %v585 = vpack.c.bf16 %v459, %v454
    %v586 = vpack.c.bf16 %v469, %v464
    %v587 = vpack.c.bf16 %v479, %v474
    %v588 = vpack.c.bf16 %v489, %v484
    %v621 = vunpack.c.l.b16 %v557
    %v622 = vunpack.c.h.b16 %v557
    %v623 = vunpack.c.l.b16 %v558
    %v624 = vunpack.c.h.b16 %v558
    %v625 = vunpack.c.l.b16 %v559
    %v626 = vunpack.c.h.b16 %v559
    %v627 = vunpack.c.l.b16 %v560
    %v628 = vunpack.c.h.b16 %v560
    %v629 = vunpack.c.l.b16 %v561
    %v630 = vunpack.c.h.b16 %v561
    %v631 = vunpack.c.l.b16 %v562
    %v632 = vunpack.c.h.b16 %v562
    %v633 = vunpack.c.l.b16 %v563
    %v634 = vunpack.c.h.b16 %v563
    %v635 = vunpack.c.l.b16 %v564
    %v636 = vunpack.c.h.b16 %v564
    %v637 = vunpack.c.l.b16 %v565
    %v638 = vunpack.c.h.b16 %v565
    %v639 = vunpack.c.l.b16 %v566
    %v640 = vunpack.c.h.b16 %v566
    %v641 = vunpack.c.l.b16 %v567
    %v642 = vunpack.c.h.b16 %v567
    %v643 = vunpack.c.l.b16 %v568
    %v644 = vunpack.c.h.b16 %v568
    %v645 = vunpack.c.l.b16 %v569
    %v646 = vunpack.c.h.b16 %v569
    %v647 = vunpack.c.l.b16 %v570
    %v648 = vunpack.c.h.b16 %v570
    %v649 = vunpack.c.l.b16 %v571
    %v650 = vunpack.c.h.b16 %v571
    %v651 = vunpack.c.l.b16 %v572
    %v652 = vunpack.c.h.b16 %v572
    %v653 = vunpack.c.l.b16 %v573
    %v654 = vunpack.c.h.b16 %v573
    %v655 = vunpack.c.l.b16 %v574
    %v656 = vunpack.c.h.b16 %v574
    %v657 = vunpack.c.l.b16 %v575
    %v658 = vunpack.c.h.b16 %v575
    %v659 = vunpack.c.l.b16 %v576
    %v660 = vunpack.c.h.b16 %v576
    %v661 = vunpack.c.l.b16 %v577
    %v662 = vunpack.c.h.b16 %v577
    %v663 = vunpack.c.l.b16 %v578
    %v664 = vunpack.c.h.b16 %v578
    %v665 = vunpack.c.l.b16 %v579
    %v666 = vunpack.c.h.b16 %v579
    %v667 = vunpack.c.l.b16 %v580
    %v668 = vunpack.c.h.b16 %v580
    %v669 = vunpack.c.l.b16 %v581
    %v670 = vunpack.c.h.b16 %v581
    %v671 = vunpack.c.l.b16 %v582
    %v672 = vunpack.c.h.b16 %v582
    %v673 = vunpack.c.l.b16 %v583
    %v674 = vunpack.c.h.b16 %v583
    %v675 = vunpack.c.l.b16 %v584
    %v676 = vunpack.c.h.b16 %v584
    %v677 = vunpack.c.l.b16 %v585
    %v678 = vunpack.c.h.b16 %v585
    %v679 = vunpack.c.l.b16 %v586
    %v680 = vunpack.c.h.b16 %v586
    %v681 = vunpack.c.l.b16 %v587
    %v682 = vunpack.c.h.b16 %v587
    %v683 = vunpack.c.l.b16 %v588
    %v684 = vunpack.c.h.b16 %v588
    %v685 = vpack.c.b16 %v621, %v621
    %v686 = vpack.c.b16 %v622, %v622
    %v687 = vpack.c.b16 %v623, %v623
    %v688 = vpack.c.b16 %v624, %v624
    %v689 = vpack.c.b16 %v625, %v625
    %v690 = vpack.c.b16 %v626, %v626
    %v691 = vpack.c.b16 %v627, %v627
    %v692 = vpack.c.b16 %v628, %v628
    %v693 = vpack.c.b16 %v629, %v629
    %v694 = vpack.c.b16 %v630, %v630
    %v695 = vpack.c.b16 %v631, %v631
    %v696 = vpack.c.b16 %v632, %v632
    %v697 = vpack.c.b16 %v633, %v633
    %v698 = vpack.c.b16 %v634, %v634
    %v699 = vpack.c.b16 %v635, %v635
    %v700 = vpack.c.b16 %v636, %v636
    %v701 = vpack.c.b16 %v637, %v637
    %v702 = vpack.c.b16 %v638, %v638
    %v703 = vpack.c.b16 %v639, %v639
    %v704 = vpack.c.b16 %v640, %v640
    %v705 = vpack.c.b16 %v641, %v641
    %v706 = vpack.c.b16 %v642, %v642
    %v707 = vpack.c.b16 %v643, %v643
    %v708 = vpack.c.b16 %v644, %v644
    %v709 = vpack.c.b16 %v645, %v645
    %v710 = vpack.c.b16 %v646, %v646
    %v711 = vpack.c.b16 %v647, %v647
    %v712 = vpack.c.b16 %v648, %v648
    %v713 = vpack.c.b16 %v649, %v649
    %v714 = vpack.c.b16 %v650, %v650
    %v715 = vpack.c.b16 %v651, %v651
    %v716 = vpack.c.b16 %v652, %v652
    %v717 = vpack.c.b16 %v653, %v653
    %v718 = vpack.c.b16 %v654, %v654
    %v719 = vpack.c.b16 %v655, %v655
    %v720 = vpack.c.b16 %v656, %v656
    %v721 = vpack.c.b16 %v657, %v657
    %v722 = vpack.c.b16 %v658, %v658
    %v723 = vpack.c.b16 %v659, %v659
    %v724 = vpack.c.b16 %v660, %v660
    %v725 = vpack.c.b16 %v661, %v661
    %v726 = vpack.c.b16 %v662, %v662
    %v727 = vpack.c.b16 %v663, %v663
    %v728 = vpack.c.b16 %v664, %v664
    %v729 = vpack.c.b16 %v665, %v665
    %v730 = vpack.c.b16 %v666, %v666
    %v731 = vpack.c.b16 %v667, %v667
    %v732 = vpack.c.b16 %v668, %v668
    %v733 = vpack.c.b16 %v669, %v669
    %v734 = vpack.c.b16 %v670, %v670
    %v735 = vpack.c.b16 %v671, %v671
    %v736 = vpack.c.b16 %v672, %v672
    %v737 = vpack.c.b16 %v673, %v673
    %v738 = vpack.c.b16 %v674, %v674
    %v739 = vpack.c.b16 %v675, %v675
    %v740 = vpack.c.b16 %v676, %v676
    %v741 = vpack.c.b16 %v677, %v677
    %v742 = vpack.c.b16 %v678, %v678
    %v743 = vpack.c.b16 %v679, %v679
    %v744 = vpack.c.b16 %v680, %v680
    %v745 = vpack.c.b16 %v681, %v681
    %v746 = vpack.c.b16 %v682, %v682
    %v747 = vpack.c.b16 %v683, %v683
    %v748 = vpack.c.b16 %v684, %v684
    %749 = vrot.lane.b32.xlu0 %v685, 127
    %v750 = vpop.permute.xlu0 %749
    %751 = vrot.lane.b32.xlu0 %v686, 127
    %v752 = vpop.permute.xlu0 %751
    %753 = vrot.lane.b32.xlu0 %v687, 127
    %v754 = vpop.permute.xlu0 %753
    %755 = vrot.lane.b32.xlu0 %v688, 127
    %v756 = vpop.permute.xlu0 %755
    %757 = vrot.lane.b32.xlu0 %v689, 127
    %v758 = vpop.permute.xlu0 %757
    %759 = vrot.lane.b32.xlu0 %v690, 127
    %v760 = vpop.permute.xlu0 %759
    %761 = vrot.lane.b32.xlu0 %v691, 127
    %v762 = vpop.permute.xlu0 %761
    %763 = vrot.lane.b32.xlu0 %v692, 127
    %v764 = vpop.permute.xlu0 %763
    %765 = vrot.lane.b32.xlu0 %v693, 127
    %v766 = vpop.permute.xlu0 %765
    %767 = vrot.lane.b32.xlu0 %v694, 127
    %v768 = vpop.permute.xlu0 %767
    %769 = vrot.lane.b32.xlu0 %v695, 127
    %v770 = vpop.permute.xlu0 %769
    %771 = vrot.lane.b32.xlu0 %v696, 127
    %v772 = vpop.permute.xlu0 %771
    %773 = vrot.lane.b32.xlu0 %v697, 127
    %v774 = vpop.permute.xlu0 %773
    %775 = vrot.lane.b32.xlu0 %v698, 127
    %v776 = vpop.permute.xlu0 %775
    %777 = vrot.lane.b32.xlu0 %v699, 127
    %v778 = vpop.permute.xlu0 %777
    %779 = vrot.lane.b32.xlu0 %v700, 127
    %v780 = vpop.permute.xlu0 %779
    %781 = vrot.lane.b32.xlu0 %v701, 127
    %v782 = vpop.permute.xlu0 %781
    %783 = vrot.lane.b32.xlu0 %v702, 127
    %v784 = vpop.permute.xlu0 %783
    %785 = vrot.lane.b32.xlu0 %v703, 127
    %v786 = vpop.permute.xlu0 %785
    %787 = vrot.lane.b32.xlu0 %v704, 127
    %v788 = vpop.permute.xlu0 %787
    %789 = vrot.lane.b32.xlu0 %v705, 127
    %v790 = vpop.permute.xlu0 %789
    %791 = vrot.lane.b32.xlu0 %v706, 127
    %v792 = vpop.permute.xlu0 %791
    %793 = vrot.lane.b32.xlu0 %v707, 127
    %v794 = vpop.permute.xlu0 %793
    %795 = vrot.lane.b32.xlu0 %v708, 127
    %v796 = vpop.permute.xlu0 %795
    %797 = vrot.lane.b32.xlu0 %v709, 127
    %v798 = vpop.permute.xlu0 %797
    %799 = vrot.lane.b32.xlu0 %v710, 127
    %v800 = vpop.permute.xlu0 %799
    %801 = vrot.lane.b32.xlu0 %v711, 127
    %v802 = vpop.permute.xlu0 %801
    %803 = vrot.lane.b32.xlu0 %v712, 127
    %v804 = vpop.permute.xlu0 %803
    %805 = vrot.lane.b32.xlu0 %v713, 127
    %v806 = vpop.permute.xlu0 %805
    %807 = vrot.lane.b32.xlu0 %v714, 127
    %v808 = vpop.permute.xlu0 %807
    %809 = vrot.lane.b32.xlu0 %v715, 127
    %v810 = vpop.permute.xlu0 %809
    %811 = vrot.lane.b32.xlu0 %v716, 127
    %v812 = vpop.permute.xlu0 %811
    %813 = vrot.lane.b32.xlu0 %v717, 127
    %v814 = vpop.permute.xlu0 %813
    %815 = vrot.lane.b32.xlu0 %v718, 127
    %v816 = vpop.permute.xlu0 %815
    %817 = vrot.lane.b32.xlu0 %v719, 127
    %v818 = vpop.permute.xlu0 %817
    %819 = vrot.lane.b32.xlu0 %v720, 127
    %v820 = vpop.permute.xlu0 %819
    %821 = vrot.lane.b32.xlu0 %v721, 127
    %v822 = vpop.permute.xlu0 %821
    %823 = vrot.lane.b32.xlu0 %v722, 127
    %v824 = vpop.permute.xlu0 %823
    %825 = vrot.lane.b32.xlu0 %v723, 127
    %v826 = vpop.permute.xlu0 %825
    %827 = vrot.lane.b32.xlu0 %v724, 127
    %v828 = vpop.permute.xlu0 %827
    %829 = vrot.lane.b32.xlu0 %v725, 127
    %v830 = vpop.permute.xlu0 %829
    %831 = vrot.lane.b32.xlu0 %v726, 127
    %v832 = vpop.permute.xlu0 %831
    %833 = vrot.lane.b32.xlu0 %v727, 127
    %v834 = vpop.permute.xlu0 %833
    %835 = vrot.lane.b32.xlu0 %v728, 127
    %v836 = vpop.permute.xlu0 %835
    %837 = vrot.lane.b32.xlu0 %v729, 127
    %v838 = vpop.permute.xlu0 %837
    %839 = vrot.lane.b32.xlu0 %v730, 127
    %v840 = vpop.permute.xlu0 %839
    %841 = vrot.lane.b32.xlu0 %v731, 127
    %v842 = vpop.permute.xlu0 %841
    %843 = vrot.lane.b32.xlu0 %v732, 127
    %v844 = vpop.permute.xlu0 %843
    %845 = vrot.lane.b32.xlu0 %v733, 127
    %v846 = vpop.permute.xlu0 %845
    %847 = vrot.lane.b32.xlu0 %v734, 127
    %v848 = vpop.permute.xlu0 %847
    %849 = vrot.lane.b32.xlu0 %v735, 127
    %v850 = vpop.permute.xlu0 %849
    %851 = vrot.lane.b32.xlu0 %v736, 127
    %v852 = vpop.permute.xlu0 %851
    %853 = vrot.lane.b32.xlu0 %v737, 127
    %v854 = vpop.permute.xlu0 %853
    %855 = vrot.lane.b32.xlu0 %v738, 127
    %v856 = vpop.permute.xlu0 %855
    %857 = vrot.lane.b32.xlu0 %v739, 127
    %v858 = vpop.permute.xlu0 %857
    %859 = vrot.lane.b32.xlu0 %v740, 127
    %v860 = vpop.permute.xlu0 %859
    %861 = vrot.lane.b32.xlu0 %v741, 127
    %v862 = vpop.permute.xlu0 %861
    %863 = vrot.lane.b32.xlu0 %v742, 127
    %v864 = vpop.permute.xlu0 %863
    %865 = vrot.lane.b32.xlu0 %v743, 127
    %v866 = vpop.permute.xlu0 %865
    %867 = vrot.lane.b32.xlu0 %v744, 127
    %v868 = vpop.permute.xlu0 %867
    %869 = vrot.lane.b32.xlu0 %v745, 127
    %v870 = vpop.permute.xlu0 %869
    %871 = vrot.lane.b32.xlu0 %v746, 127
    %v872 = vpop.permute.xlu0 %871
    %873 = vrot.lane.b32.xlu0 %v747, 127
    %v874 = vpop.permute.xlu0 %873
    %875 = vrot.lane.b32.xlu0 %v748, 127
    %v876 = vpop.permute.xlu0 %875
    %vm941 = vcmask 3072
    %942 = vst.msk [vmem:[%s3] sm:$0xf] %vm941, %v750
    %943 = vst.msk [vmem:[%s3 + $0x4] sm:$0xf] %vm941, %v752
    %944 = vst.msk [vmem:[%s3 + $0x8] sm:$0xf] %vm941, %v754
    %945 = vst.msk [vmem:[%s3 + $0xc] sm:$0xf] %vm941, %v756
    %946 = vst.msk [vmem:[%s3 + $0x10] sm:$0xf] %vm941, %v758
    %947 = vst.msk [vmem:[%s3 + $0x14] sm:$0xf] %vm941, %v760
    %948 = vst.msk [vmem:[%s3 + $0x18] sm:$0xf] %vm941, %v762
    %949 = vst.msk [vmem:[%s3 + $0x1c] sm:$0xf] %vm941, %v764
    %950 = vst.msk [vmem:[%s3 + $0x20] sm:$0xf] %vm941, %v766
    %951 = vst.msk [vmem:[%s3 + $0x24] sm:$0xf] %vm941, %v768
    %952 = vst.msk [vmem:[%s3 + $0x28] sm:$0xf] %vm941, %v770
    %953 = vst.msk [vmem:[%s3 + $0x2c] sm:$0xf] %vm941, %v772
    %954 = vst.msk [vmem:[%s3 + $0x30] sm:$0xf] %vm941, %v774
    %955 = vst.msk [vmem:[%s3 + $0x34] sm:$0xf] %vm941, %v776
    %956 = vst.msk [vmem:[%s3 + $0x38] sm:$0xf] %vm941, %v778
    %957 = vst.msk [vmem:[%s3 + $0x3c] sm:$0xf] %vm941, %v780
    %958 = vst.msk [vmem:[%s3 + $0x40] sm:$0xf] %vm941, %v782
    %959 = vst.msk [vmem:[%s3 + $0x44] sm:$0xf] %vm941, %v784
    %960 = vst.msk [vmem:[%s3 + $0x48] sm:$0xf] %vm941, %v786
    %961 = vst.msk [vmem:[%s3 + $0x4c] sm:$0xf] %vm941, %v788
    %962 = vst.msk [vmem:[%s3 + $0x50] sm:$0xf] %vm941, %v790
    %963 = vst.msk [vmem:[%s3 + $0x54] sm:$0xf] %vm941, %v792
    %964 = vst.msk [vmem:[%s3 + $0x58] sm:$0xf] %vm941, %v794
    %965 = vst.msk [vmem:[%s3 + $0x5c] sm:$0xf] %vm941, %v796
    %966 = vst.msk [vmem:[%s3 + $0x60] sm:$0xf] %vm941, %v798
    %967 = vst.msk [vmem:[%s3 + $0x64] sm:$0xf] %vm941, %v800
    %968 = vst.msk [vmem:[%s3 + $0x68] sm:$0xf] %vm941, %v802
    %969 = vst.msk [vmem:[%s3 + $0x6c] sm:$0xf] %vm941, %v804
    %970 = vst.msk [vmem:[%s3 + $0x70] sm:$0xf] %vm941, %v806
    %971 = vst.msk [vmem:[%s3 + $0x74] sm:$0xf] %vm941, %v808
    %972 = vst.msk [vmem:[%s3 + $0x78] sm:$0xf] %vm941, %v810
    %973 = vst.msk [vmem:[%s3 + $0x7c] sm:$0xf] %vm941, %v812
    %974 = vst.msk [vmem:[%s3 + $0x80] sm:$0xf] %vm941, %v814
    %975 = vst.msk [vmem:[%s3 + $0x84] sm:$0xf] %vm941, %v816
    %976 = vst.msk [vmem:[%s3 + $0x88] sm:$0xf] %vm941, %v818
    %977 = vst.msk [vmem:[%s3 + $0x8c] sm:$0xf] %vm941, %v820
    %978 = vst.msk [vmem:[%s3 + $0x90] sm:$0xf] %vm941, %v822
    %979 = vst.msk [vmem:[%s3 + $0x94] sm:$0xf] %vm941, %v824
    %980 = vst.msk [vmem:[%s3 + $0x98] sm:$0xf] %vm941, %v826
    %981 = vst.msk [vmem:[%s3 + $0x9c] sm:$0xf] %vm941, %v828
    %982 = vst.msk [vmem:[%s3 + $0xa0] sm:$0xf] %vm941, %v830
    %983 = vst.msk [vmem:[%s3 + $0xa4] sm:$0xf] %vm941, %v832
    %984 = vst.msk [vmem:[%s3 + $0xa8] sm:$0xf] %vm941, %v834
    %985 = vst.msk [vmem:[%s3 + $0xac] sm:$0xf] %vm941, %v836
    %986 = vst.msk [vmem:[%s3 + $0xb0] sm:$0xf] %vm941, %v838
    %987 = vst.msk [vmem:[%s3 + $0xb4] sm:$0xf] %vm941, %v840
    %988 = vst.msk [vmem:[%s3 + $0xb8] sm:$0xf] %vm941, %v842
    %989 = vst.msk [vmem:[%s3 + $0xbc] sm:$0xf] %vm941, %v844
    %990 = vst.msk [vmem:[%s3 + $0xc0] sm:$0xf] %vm941, %v846
    %991 = vst.msk [vmem:[%s3 + $0xc4] sm:$0xf] %vm941, %v848
    %992 = vst.msk [vmem:[%s3 + $0xc8] sm:$0xf] %vm941, %v850
    %993 = vst.msk [vmem:[%s3 + $0xcc] sm:$0xf] %vm941, %v852
    %994 = vst.msk [vmem:[%s3 + $0xd0] sm:$0xf] %vm941, %v854
    %995 = vst.msk [vmem:[%s3 + $0xd4] sm:$0xf] %vm941, %v856
    %996 = vst.msk [vmem:[%s3 + $0xd8] sm:$0xf] %vm941, %v858
    %997 = vst.msk [vmem:[%s3 + $0xdc] sm:$0xf] %vm941, %v860
    %998 = vst.msk [vmem:[%s3 + $0xe0] sm:$0xf] %vm941, %v862
    %999 = vst.msk [vmem:[%s3 + $0xe4] sm:$0xf] %vm941, %v864
    %1000 = vst.msk [vmem:[%s3 + $0xe8] sm:$0xf] %vm941, %v866
    %1001 = vst.msk [vmem:[%s3 + $0xec] sm:$0xf] %vm941, %v868
    %1002 = vst.msk [vmem:[%s3 + $0xf0] sm:$0xf] %vm941, %v870
    %1003 = vst.msk [vmem:[%s3 + $0xf4] sm:$0xf] %vm941, %v872
    %1004 = vst.msk [vmem:[%s3 + $0xf8] sm:$0xf] %vm941, %v874
    %1005 = vst.msk [vmem:[%s3 + $0xfc] sm:$0xf] %vm941, %v876
    // Predicated region
    $region14: #{tpu_custom_call.1} parent=1 // pred_check
      _
    $region15: #{tpu_custom_call.1} parent=1 // pred_check_branch
      %1007 = sbr.rel (0) target = $region17
    $region16: #{tpu_custom_call.1} parent=1 // pred_region
      _
    $region17: #{tpu_custom_call.1} parent=1 // pred_fallthru
      _
    // Predicated region
    $region18: #{tpu_custom_call.1} parent=1 // pred_check
      _
    $region19: #{tpu_custom_call.1} parent=1 // pred_check_branch
      %1009 = sbr.rel (0) target = $region21
    $region20: #{tpu_custom_call.1} parent=1 // pred_region
      _
    $region21: #{tpu_custom_call.1} parent=1 // pred_fallthru
      _
    // Predicated region
    $region22: #{tpu_custom_call.1} parent=1 // pred_check
      _
    $region23: #{tpu_custom_call.1} parent=1 // pred_check_branch
      %1011 = sbr.rel (0) target = $region25
    $region24: #{tpu_custom_call.1} parent=1 // pred_region
      _
    $region25: #{tpu_custom_call.1} parent=1 // pred_fallthru
      _
    // Predicated region
    $region26: #{tpu_custom_call.1} parent=1 // pred_check
      _
    $region27: #{tpu_custom_call.1} parent=1 // pred_check_branch
      %1013 = sbr.rel (0) target = $region29
    $region28: #{tpu_custom_call.1} parent=1 // pred_region
      _
    $region29: #{tpu_custom_call.1} parent=1 // pred_fallthru
      _
    %1014 = vsyncpa [#allocation3], 1

</llo_original>
